<compile_context>
chip_gen: v5e
topology: v5e:2x2
jax: 0.10.0
libtpu: 0.0.40
codegen_flags: <defaults>
</compile_context>

<pallas_src>
import functools

import jax
import jax.numpy as jnp
from jax import lax
from jax.experimental import pallas as pl
from jax.experimental.pallas import tpu as pltpu


def _dw_kernel(x_ref, w_ref, b_ref, o_ref, pad_ref, *, W, PAD):
    # x_ref  : (R, L)        R = N*C rows on sublanes, L = H*W on lanes
    # w_ref  : (R, 9)        per-row taps (dy-major); center tap already +1.0
    # b_ref  : (R, 1)        conv bias per row
    # o_ref  : (R, L)        output
    # pad_ref: (R, L+2*PAD)  VMEM scratch with a PAD-wide zero halo on each side
    R, L = o_ref.shape
    x = x_ref[...].astype(jnp.float32)
    w = w_ref[...].astype(jnp.float32)   # hoisted: one load covers all 9 taps
    b = b_ref[...].astype(jnp.float32)

    # Zero only the two halo regions (128-aligned); interior is fully overwritten.
    pad_ref[:, :PAD] = jnp.zeros((R, PAD), jnp.float32)
    pad_ref[:, PAD + L:] = jnp.zeros((R, PAD), jnp.float32)
    pad_ref[:, PAD:PAD + L] = x

    # dx validity masks built in-kernel from an iota (no mask DMA / extra input).
    pos = lax.broadcasted_iota(jnp.int32, (R, L), 1)
    col = (pos & (W - 1)) if (W & (W - 1)) == 0 else (pos % W)
    ml = (col >= 1).astype(jnp.float32)        # source column valid when dx = -1
    mr = (col <= W - 2).astype(jnp.float32)    # source column valid when dx = +1

    # Bias-initialized accumulator; residual is folded into the center tap weight.
    acc = jnp.broadcast_to(b, (R, L))

    for dy in (-1, 0, 1):
        for dx in (-1, 0, 1):
            k = (dy + 1) * 3 + (dx + 1)
            s = dy * W + dx                    # shift in the flattened axis
            if s == 0:
                v = x
            else:
                v = pad_ref[:, PAD + s:PAD + s + L]
            if dx == -1:
                v = v * ml
            elif dx == 1:
                v = v * mr
            acc = acc + v * w[:, k:k + 1]      # (R,1) lane-broadcast per row
    o_ref[...] = acc.astype(o_ref.dtype)


@jax.jit
def depthwise_encoding(x_nchw, weight, bias):
    """x_nchw: (N, C, H, W); weight: (C, 1, 3, 3); bias: (C,). Returns (N, C, H, W)."""
    N, C, H, W = x_nchw.shape
    L = H * W
    R = N * C
    PAD = ((W + 1 + 127) // 128) * 128         # halo >= W+1, kept 128-aligned

    x2 = x_nchw.reshape(R, L)                  # contiguous reshape (no transpose)

    # Per-channel taps with residual folded into the center tap; tiled over batch
    # so each sublane-row carries its own taps/bias.
    w_taps = weight.reshape(C, 9).astype(jnp.float32)
    w_taps = w_taps.at[:, 4].add(1.0)
    w_rows = jnp.tile(w_taps, (N, 1))                                    # (R, 9)
    b_rows = jnp.tile(bias.reshape(C, 1).astype(jnp.float32), (N, 1))    # (R, 1)

    kernel = functools.partial(_dw_kernel, W=W, PAD=PAD)
    out2 = pl.pallas_call(
        kernel,
        out_shape=jax.ShapeDtypeStruct((R, L), x_nchw.dtype),
        grid_spec=pltpu.PrefetchScalarGridSpec(
            num_scalar_prefetch=0,
            grid=(1,),                          # one full-sublane step
            in_specs=[
                pl.BlockSpec((R, L), lambda i: (0, 0)),
                pl.BlockSpec((R, 9), lambda i: (0, 0)),
                pl.BlockSpec((R, 1), lambda i: (0, 0)),
            ],
            out_specs=pl.BlockSpec((R, L), lambda i: (0, 0)),
            scratch_shapes=[pltpu.VMEM((R, L + 2 * PAD), jnp.float32)],
        ),
        compiler_params=pltpu.CompilerParams(
            dimension_semantics=("arbitrary",)),
    )(x2, w_rows, b_rows)

    return out2.reshape(N, C, H, W)


def _reference(x_nchw, weight, bias):
    # Pure-JAX reference: depthwise conv (feature_group_count=C) + residual.
    C = x_nchw.shape[1]
    y = lax.conv_general_dilated(
        x_nchw, weight, window_strides=(1, 1), padding=((1, 1), (1, 1)),
        dimension_numbers=("NCHW", "OIHW", "NCHW"), feature_group_count=C)
    return x_nchw + y + bias.reshape(1, C, 1, 1)


if __name__ == "__main__":
    key = jax.random.PRNGKey(0)
    k_x, k_w, k_b = jax.random.split(key, 3)

    N, C, H, W = 2, 4, 16, 16
    x = jax.random.normal(k_x, (N, C, H, W), dtype=jnp.float32)

    # Deterministic init mimicking nn.Conv2d defaults: U(-1/sqrt(fan_in), +1/sqrt(fan_in)),
    # fan_in = 1 * 3 * 3 = 9 for depthwise.
    bound = 1.0 / 3.0
    weight = jax.random.uniform(k_w, (C, 1, 3, 3), jnp.float32, -bound, bound)
    bias = jax.random.uniform(k_b, (C,), jnp.float32, -bound, bound)

    out = depthwise_encoding(x, weight, bias)
    out = jax.block_until_ready(out)

    ref = _reference(x, weight, bias)
    assert out.shape == (N, C, H, W)
    assert jnp.allclose(out, ref, atol=1e-5, rtol=1e-5), "mismatch vs JAX reference"

    print("KERNEL_OK")
</pallas_src>

<mosaic_0001>
module attributes {stable_mosaic.version = 11 : i64} {
  func.func @_dw_kernel(%arg0: i32, %arg1: memref<8x256xf32, #tpu.memory_space<vmem>>, %arg2: memref<8x9xf32, #tpu.memory_space<vmem>>, %arg3: memref<8x1xf32, #tpu.memory_space<vmem>>, %arg4: memref<8x256xf32, #tpu.memory_space<vmem>>, %arg5: memref<8x512xf32, #tpu.memory_space<vmem>>) attributes {dimension_semantics = [#tpu.dimension_semantics<arbitrary>], iteration_bounds = array<i64: 1>, scalar_prefetch = 0 : i64, scratch_operands = 1 : i64, tpu.core_type = #tpu.core_type<tc>, window_params = [{pipeline_mode = #tpu.pipeline_mode<synchronous>, transform_indices = @transform_0, window_bounds = array<i64: 8, 256>}, {pipeline_mode = #tpu.pipeline_mode<synchronous>, transform_indices = @transform_1, window_bounds = array<i64: 8, 9>}, {pipeline_mode = #tpu.pipeline_mode<synchronous>, transform_indices = @transform_2, window_bounds = array<i64: 8, 1>}, {pipeline_mode = #tpu.pipeline_mode<synchronous>, transform_indices = @transform_3, window_bounds = array<i64: 8, 256>}]} {
    %c0 = arith.constant 0 : index
    %c0_0 = arith.constant 0 : index
    %0 = vector.load %arg1[%c0, %c0_0] : memref<8x256xf32, #tpu.memory_space<vmem>>, vector<8x256xf32>
    %c0_1 = arith.constant 0 : index
    %c0_2 = arith.constant 0 : index
    %1 = vector.load %arg2[%c0_1, %c0_2] : memref<8x9xf32, #tpu.memory_space<vmem>>, vector<8x9xf32>
    %c0_3 = arith.constant 0 : index
    %c0_4 = arith.constant 0 : index
    %2 = vector.load %arg3[%c0_3, %c0_4] : memref<8x1xf32, #tpu.memory_space<vmem>>, vector<8x1xf32>
    %cst = arith.constant 0.000000e+00 : f32
    %3 = vector.broadcast %cst : f32 to vector<8x128xf32>
    %c0_5 = arith.constant 0 : index
    %c0_6 = arith.constant 0 : index
    %4 = vector.load %arg5[%c0_5, %c0_6] : memref<8x512xf32, #tpu.memory_space<vmem>>, vector<8x128xf32>
    tpu.vector_store %arg5[%c0_5, %c0_6], %3 {strides = array<i32>} : memref<8x512xf32, #tpu.memory_space<vmem>>, vector<8x128xf32>,
    %cst_7 = arith.constant 0.000000e+00 : f32
    %5 = vector.broadcast %cst_7 : f32 to vector<8x128xf32>
    %c0_8 = arith.constant 0 : index
    %c384 = arith.constant 384 : index
    %6 = vector.load %arg5[%c0_8, %c384] : memref<8x512xf32, #tpu.memory_space<vmem>>, vector<8x128xf32>
    tpu.vector_store %arg5[%c0_8, %c384], %5 {strides = array<i32>} : memref<8x512xf32, #tpu.memory_space<vmem>>, vector<8x128xf32>,
    %c0_9 = arith.constant 0 : index
    %c128 = arith.constant 128 : index
    %7 = vector.load %arg5[%c0_9, %c128] : memref<8x512xf32, #tpu.memory_space<vmem>>, vector<8x256xf32>
    tpu.vector_store %arg5[%c0_9, %c128], %0 {strides = array<i32>} : memref<8x512xf32, #tpu.memory_space<vmem>>, vector<8x256xf32>,
    %8 = tpu.iota {dimensions = array<i32: 1>} : vector<8x256xi32>
    %c15_i32 = arith.constant 15 : i32
    %9 = vector.broadcast %c15_i32 : i32 to vector<8x256xi32>
    %10 = arith.andi %8, %9 : vector<8x256xi32>
    %c1_i32 = arith.constant 1 : i32
    %11 = vector.broadcast %c1_i32 : i32 to vector<8x256xi32>
    %12 = arith.cmpi sge, %10, %11 : vector<8x256xi32>
    %13 = arith.extui %12 : vector<8x256xi1> to vector<8x256xi32>
    %14 = arith.sitofp %13 : vector<8x256xi32> to vector<8x256xf32>
    %c14_i32 = arith.constant 14 : i32
    %15 = vector.broadcast %c14_i32 : i32 to vector<8x256xi32>
    %16 = arith.cmpi sle, %10, %15 : vector<8x256xi32>
    %17 = arith.extui %16 : vector<8x256xi1> to vector<8x256xi32>
    %18 = arith.sitofp %17 : vector<8x256xi32> to vector<8x256xf32>
    %19 = vector.shape_cast %2 : vector<8x1xf32> to vector<8x1xf32>
    %20 = vector.broadcast %19 : vector<8x1xf32> to vector<8x256xf32>
    %c0_10 = arith.constant 0 : index
    %c111 = arith.constant 111 : index
    %21 = vector.load %arg5[%c0_10, %c111] : memref<8x512xf32, #tpu.memory_space<vmem>>, vector<8x256xf32>
    %22 = arith.mulf %21, %14 : vector<8x256xf32>
    %23 = vector.extract_strided_slice %1 {offsets = [0, 0], sizes = [8, 1], strides = [1, 1]} : vector<8x9xf32> to vector<8x1xf32>
    %24 = vector.broadcast %23 : vector<8x1xf32> to vector<8x256xf32>
    %25 = arith.mulf %22, %24 : vector<8x256xf32>
    %26 = arith.addf %20, %25 : vector<8x256xf32>
    %c0_11 = arith.constant 0 : index
    %c112 = arith.constant 112 : index
    %27 = vector.load %arg5[%c0_11, %c112] : memref<8x512xf32, #tpu.memory_space<vmem>>, vector<8x256xf32>
    %28 = vector.extract_strided_slice %1 {offsets = [0, 1], sizes = [8, 1], strides = [1, 1]} : vector<8x9xf32> to vector<8x1xf32>
    %29 = vector.broadcast %28 : vector<8x1xf32> to vector<8x256xf32>
    %30 = arith.mulf %27, %29 : vector<8x256xf32>
    %31 = arith.addf %26, %30 : vector<8x256xf32>
    %c0_12 = arith.constant 0 : index
    %c113 = arith.constant 113 : index
    %32 = vector.load %arg5[%c0_12, %c113] : memref<8x512xf32, #tpu.memory_space<vmem>>, vector<8x256xf32>
    %33 = arith.mulf %32, %18 : vector<8x256xf32>
    %34 = vector.extract_strided_slice %1 {offsets = [0, 2], sizes = [8, 1], strides = [1, 1]} : vector<8x9xf32> to vector<8x1xf32>
    %35 = vector.broadcast %34 : vector<8x1xf32> to vector<8x256xf32>
    %36 = arith.mulf %33, %35 : vector<8x256xf32>
    %37 = arith.addf %31, %36 : vector<8x256xf32>
    %c0_13 = arith.constant 0 : index
    %c127 = arith.constant 127 : index
    %38 = vector.load %arg5[%c0_13, %c127] : memref<8x512xf32, #tpu.memory_space<vmem>>, vector<8x256xf32>
    %39 = arith.mulf %38, %14 : vector<8x256xf32>
    %40 = vector.extract_strided_slice %1 {offsets = [0, 3], sizes = [8, 1], strides = [1, 1]} : vector<8x9xf32> to vector<8x1xf32>
    %41 = vector.broadcast %40 : vector<8x1xf32> to vector<8x256xf32>
    %42 = arith.mulf %39, %41 : vector<8x256xf32>
    %43 = arith.addf %37, %42 : vector<8x256xf32>
    %44 = vector.extract_strided_slice %1 {offsets = [0, 4], sizes = [8, 1], strides = [1, 1]} : vector<8x9xf32> to vector<8x1xf32>
    %45 = vector.broadcast %44 : vector<8x1xf32> to vector<8x256xf32>
    %46 = arith.mulf %0, %45 : vector<8x256xf32>
    %47 = arith.addf %43, %46 : vector<8x256xf32>
    %c0_14 = arith.constant 0 : index
    %c129 = arith.constant 129 : index
    %48 = vector.load %arg5[%c0_14, %c129] : memref<8x512xf32, #tpu.memory_space<vmem>>, vector<8x256xf32>
    %49 = arith.mulf %48, %18 : vector<8x256xf32>
    %50 = vector.extract_strided_slice %1 {offsets = [0, 5], sizes = [8, 1], strides = [1, 1]} : vector<8x9xf32> to vector<8x1xf32>
    %51 = vector.broadcast %50 : vector<8x1xf32> to vector<8x256xf32>
    %52 = arith.mulf %49, %51 : vector<8x256xf32>
    %53 = arith.addf %47, %52 : vector<8x256xf32>
    %c0_15 = arith.constant 0 : index
    %c143 = arith.constant 143 : index
    %54 = vector.load %arg5[%c0_15, %c143] : memref<8x512xf32, #tpu.memory_space<vmem>>, vector<8x256xf32>
    %55 = arith.mulf %54, %14 : vector<8x256xf32>
    %56 = vector.extract_strided_slice %1 {offsets = [0, 6], sizes = [8, 1], strides = [1, 1]} : vector<8x9xf32> to vector<8x1xf32>
    %57 = vector.broadcast %56 : vector<8x1xf32> to vector<8x256xf32>
    %58 = arith.mulf %55, %57 : vector<8x256xf32>
    %59 = arith.addf %53, %58 : vector<8x256xf32>
    %c0_16 = arith.constant 0 : index
    %c144 = arith.constant 144 : index
    %60 = vector.load %arg5[%c0_16, %c144] : memref<8x512xf32, #tpu.memory_space<vmem>>, vector<8x256xf32>
    %61 = vector.extract_strided_slice %1 {offsets = [0, 7], sizes = [8, 1], strides = [1, 1]} : vector<8x9xf32> to vector<8x1xf32>
    %62 = vector.broadcast %61 : vector<8x1xf32> to vector<8x256xf32>
    %63 = arith.mulf %60, %62 : vector<8x256xf32>
    %64 = arith.addf %59, %63 : vector<8x256xf32>
    %c0_17 = arith.constant 0 : index
    %c145 = arith.constant 145 : index
    %65 = vector.load %arg5[%c0_17, %c145] : memref<8x512xf32, #tpu.memory_space<vmem>>, vector<8x256xf32>
    %66 = arith.mulf %65, %18 : vector<8x256xf32>
    %67 = vector.extract_strided_slice %1 {offsets = [0, 8], sizes = [8, 1], strides = [1, 1]} : vector<8x9xf32> to vector<8x1xf32>
    %68 = vector.broadcast %67 : vector<8x1xf32> to vector<8x256xf32>
    %69 = arith.mulf %66, %68 : vector<8x256xf32>
    %70 = arith.addf %64, %69 : vector<8x256xf32>
    %c0_18 = arith.constant 0 : index
    %c0_19 = arith.constant 0 : index
    %71 = vector.load %arg4[%c0_18, %c0_19] : memref<8x256xf32, #tpu.memory_space<vmem>>, vector<8x256xf32>
    tpu.vector_store %arg4[%c0_18, %c0_19], %70 {strides = array<i32>} : memref<8x256xf32, #tpu.memory_space<vmem>>, vector<8x256xf32>,
    return
  }
  func.func @transform_0(%arg0: i32) -> (i32, i32) {
    %c0_i32 = arith.constant 0 : i32
    %c0_i32_0 = arith.constant 0 : i32
    %c0_i32_1 = arith.constant 0 : i32
    return %c0_i32, %c0_i32_0 : i32, i32
  }
  func.func @transform_1(%arg0: i32) -> (i32, i32) {
    %c0_i32 = arith.constant 0 : i32
    %c0_i32_0 = arith.constant 0 : i32
    %c0_i32_1 = arith.constant 0 : i32
    return %c0_i32, %c0_i32_0 : i32, i32
  }
  func.func @transform_2(%arg0: i32) -> (i32, i32) {
    %c0_i32 = arith.constant 0 : i32
    %c0_i32_0 = arith.constant 0 : i32
    %c0_i32_1 = arith.constant 0 : i32
    return %c0_i32, %c0_i32_0 : i32, i32
  }
  func.func @transform_3(%arg0: i32) -> (i32, i32) {
    %c0_i32 = arith.constant 0 : i32
    %c0_i32_0 = arith.constant 0 : i32
    %c0_i32_1 = arith.constant 0 : i32
    return %c0_i32, %c0_i32_0 : i32, i32
  }
}

</mosaic_0001>

<llo_original>
// kernel: depthwise_encoding.1
$region0: #{depthwise_encoding.1}
  #allocation0 [shape = 'u32[]', space=smem, size = 0x4, offset = 0x4, fixed_abs, tag = 'smem constant byte address 0x4 - core index']
  #allocation1 [shape = 'u32[72,128]{1,0:T(1,128)}', space=vmem, size = 0x9000, scoped, tag = 'internal scratch']
  #allocation2 [shape = 'f32[8,512]{1,0:T(8,128)}', space=vmem, size = 0x4000, scoped, tag = 'scratch operand']
  %s0 = inlined_call_operand.vmem [shape: f32[8,256], index: 0, kind: input, shape index: {}]
  %s1 = inlined_call_operand.vmem [shape: f32[8,9], index: 1, kind: input, shape index: {}]
  %s2 = inlined_call_operand.vmem [shape: f32[8,1], index: 2, kind: input, shape index: {}]
  %s3 = inlined_call_operand.vmem [shape: f32[8,256], index: 3, kind: output, shape index: {}]
  %s4 = sld [smem:[#allocation0]]
  $region22: #{depthwise_encoding.1} parent=0
    _
  %s6 = ssub.s32 1, %s4
  %s7 = scalar_select 0, %s6, %s4
  // Predicated region
  $region2: #{depthwise_encoding.1} parent=0 // pred_check
    _
  $region3: #{depthwise_encoding.1} parent=0 // pred_check_branch
    %9 = sbr.rel (0) target = $region5
  $region4: #{depthwise_encoding.1} parent=0 // pred_region
    _
  $region5: #{depthwise_encoding.1} parent=0 // pred_fallthru
    _
  // Predicated region
  $region6: #{depthwise_encoding.1} parent=0 // pred_check
    _
  $region7: #{depthwise_encoding.1} parent=0 // pred_check_branch
    %11 = sbr.rel (0) target = $region9
  $region8: #{depthwise_encoding.1} parent=0 // pred_region
    _
  $region9: #{depthwise_encoding.1} parent=0 // pred_fallthru
    _
  // Predicated region
  $region10: #{depthwise_encoding.1} parent=0 // pred_check
    _
  $region11: #{depthwise_encoding.1} parent=0 // pred_check_branch
    %13 = sbr.rel (0) target = $region13
  $region12: #{depthwise_encoding.1} parent=0 // pred_region
    _
  $region13: #{depthwise_encoding.1} parent=0 // pred_fallthru
    _
  %v14 = vld [vmem:[%s0] sm:$0xff]
  %v15 = vld [vmem:[%s0 + $0x8] sm:$0xff]
  %v16 = vld [vmem:[%s1] sm:$0xff]
  %v17 = vld [vmem:[%s2] sm:$0xff]
  %18 = vst [vmem:[#allocation2] sm:$0xff] 0.0
  %19 = vst [vmem:[#allocation2 + $0x18] sm:$0xff] 0.0
  %20 = vst [vmem:[#allocation2 + $0x8] sm:$0xff] %v14
  %21 = vst [vmem:[#allocation2 + $0x10] sm:$0xff] %v15
  %v22 = vlaneseq
  %v23 = vand.u32 %v22, 127
  %v24 = vadd.s32 %v23, 128
  %v25 = vand.u32 %v23, 15
  %v26 = vand.u32 %v24, 15
  %vm27 = vcmp.ge.s32.totalorder %v25, 1
  %vm28 = vcmp.ge.s32.totalorder %v26, 1
  %v29 = vsel %vm27, 1, 0
  %v30 = vsel %vm28, 1, 0
  %v31 = vcvt.s32.f32 %v29
  %v32 = vcvt.s32.f32 %v30
  %vm33 = vcmp.le.s32.totalorder %v25, 14
  %vm34 = vcmp.le.s32.totalorder %v26, 14
  %v35 = vsel %vm33, 1, 0
  %v36 = vsel %vm34, 1, 0
  %v37 = vcvt.s32.f32 %v35
  %v38 = vcvt.s32.f32 %v36
  %40 = vset.pattern.permute.xlu0 0
  %41 = vperm.xlu0 %40, %v17
  %v42 = vpop.permute.xlu0 %41
  %v44 = vld [vmem:[#allocation2] sm:$0xff]
  %v45 = vld [vmem:[#allocation2 + $0x8] sm:$0xff]
  %v46 = vld [vmem:[#allocation2 + $0x10] sm:$0xff]
  %49 = vrot.lane.b32.xlu0 %v31, 111
  %v50 = vpop.permute.xlu0 %49
  %51 = vrot.lane.b32.xlu0 %v32, 111
  %v52 = vpop.permute.xlu0 %51
  %vm53 = vcmask 908288
  %v54 = vsel %vm53, %v50, %v52
  %v58 = vmul.f32 %v44, %v50
  %v59 = vmul.f32 %v45, %v54
  %v60 = vmul.f32 %v46, %v52
  %62 = vset.pattern.permute.xlu0 0
  %63 = vperm.xlu0 %62, %v16
  %v64 = vpop.permute.xlu0 %63
  %v66 = vmul.f32 %v58, %v64
  %v67 = vmul.f32 %v59, %v64
  %v68 = vmul.f32 %v60, %v64
  %v69 = vadd.f32 %v42, %v66
  %v70 = vadd.f32 %v42, %v67
  %v71 = vadd.f32 %v42, %v68
  %72 = vset.pattern.permute.xlu0 1
  %73 = vperm.xlu0 %72, %v16
  %v74 = vpop.permute.xlu0 %73
  %v76 = vmul.f32 %v44, %v74
  %v77 = vmul.f32 %v45, %v74
  %v78 = vmul.f32 %v46, %v74
  %82 = vrot.lane.b32.xlu0 %v76, 127
  %v83 = vpop.permute.xlu0 %82
  %84 = vrot.lane.b32.xlu0 %v77, 127
  %v85 = vpop.permute.xlu0 %84
  %86 = vrot.lane.b32.xlu0 %v78, 127
  %v87 = vpop.permute.xlu0 %86
  %vm88 = vcmask 1039360
  %v89 = vsel %vm88, %v83, %v85
  %v90 = vsel %vm88, %v85, %v87
  %v94 = vadd.f32 %v69, %v89
  %v95 = vadd.f32 %v70, %v90
  %v96 = vadd.f32 %v71, %v87
  %99 = vrot.lane.b32.xlu0 %v37, 113
  %v100 = vpop.permute.xlu0 %99
  %101 = vrot.lane.b32.xlu0 %v38, 113
  %v102 = vpop.permute.xlu0 %101
  %vm103 = vcmask 924672
  %v104 = vsel %vm103, %v100, %v102
  %v108 = vmul.f32 %v44, %v100
  %v109 = vmul.f32 %v45, %v104
  %v110 = vmul.f32 %v46, %v102
  %111 = vset.pattern.permute.xlu0 2
  %112 = vperm.xlu0 %111, %v16
  %v113 = vpop.permute.xlu0 %112
  %v115 = vmul.f32 %v108, %v113
  %v116 = vmul.f32 %v109, %v113
  %v117 = vmul.f32 %v110, %v113
  %121 = vrot.lane.b32.xlu0 %v115, 126
  %v122 = vpop.permute.xlu0 %121
  %123 = vrot.lane.b32.xlu0 %v116, 126
  %v124 = vpop.permute.xlu0 %123
  %125 = vrot.lane.b32.xlu0 %v117, 126
  %v126 = vpop.permute.xlu0 %125
  %vm127 = vcmask 1031168
  %v128 = vsel %vm127, %v122, %v124
  %v129 = vsel %vm127, %v124, %v126
  %v133 = vadd.f32 %v94, %v128
  %v134 = vadd.f32 %v95, %v129
  %v135 = vadd.f32 %v96, %v126
  %136 = vrot.lane.b32.xlu0 %v31, 127
  %v137 = vpop.permute.xlu0 %136
  %138 = vrot.lane.b32.xlu0 %v32, 127
  %v139 = vpop.permute.xlu0 %138
  %v140 = vsel %vm88, %v137, %v139
  %v144 = vmul.f32 %v44, %v137
  %v145 = vmul.f32 %v45, %v140
  %v146 = vmul.f32 %v46, %v139
  %147 = vset.pattern.permute.xlu0 3
  %148 = vperm.xlu0 %147, %v16
  %v149 = vpop.permute.xlu0 %148
  %v151 = vmul.f32 %v144, %v149
  %v152 = vmul.f32 %v145, %v149
  %v153 = vmul.f32 %v146, %v149
  %157 = vrot.lane.b32.xlu0 %v151, 112
  %v158 = vpop.permute.xlu0 %157
  %159 = vrot.lane.b32.xlu0 %v152, 112
  %v160 = vpop.permute.xlu0 %159
  %161 = vrot.lane.b32.xlu0 %v153, 112
  %v162 = vpop.permute.xlu0 %161
  %vm163 = vcmask 916480
  %v164 = vsel %vm163, %v158, %v160
  %v165 = vsel %vm163, %v160, %v162
  %v169 = vadd.f32 %v133, %v164
  %v170 = vadd.f32 %v134, %v165
  %v171 = vadd.f32 %v135, %v162
  %172 = vset.pattern.permute.xlu0 4
  %173 = vperm.xlu0 %172, %v16
  %v174 = vpop.permute.xlu0 %173
  %v176 = vmul.f32 %v14, %v174
  %v177 = vmul.f32 %v15, %v174
  %180 = vrot.lane.b32.xlu0 %v176, 111
  %v181 = vpop.permute.xlu0 %180
  %182 = vrot.lane.b32.xlu0 %v177, 111
  %v183 = vpop.permute.xlu0 %182
  %v184 = vsel %vm53, %v181, %v183
  %v188 = vadd.f32 %v169, %v181
  %v189 = vadd.f32 %v170, %v184
  %v190 = vadd.f32 %v171, %v183
  %v191 = vld [vmem:[#allocation2 + $0x8] sm:$0xff]
  %v192 = vld [vmem:[#allocation2 + $0x10] sm:$0xff]
  %v193 = vld [vmem:[#allocation2 + $0x18] sm:$0xff]
  %194 = vrot.lane.b32.xlu0 %v37, 1
  %v195 = vpop.permute.xlu0 %194
  %196 = vrot.lane.b32.xlu0 %v38, 1
  %v197 = vpop.permute.xlu0 %196
  %vm198 = vcmask 7168
  %v199 = vsel %vm198, %v195, %v197
  %v203 = vmul.f32 %v191, %v195
  %v204 = vmul.f32 %v192, %v199
  %v205 = vmul.f32 %v193, %v197
  %206 = vset.pattern.permute.xlu0 5
  %207 = vperm.xlu0 %206, %v16
  %v208 = vpop.permute.xlu0 %207
  %v210 = vmul.f32 %v203, %v208
  %v211 = vmul.f32 %v204, %v208
  %v212 = vmul.f32 %v205, %v208
  %216 = vrot.lane.b32.xlu0 %v210, 110
  %v217 = vpop.permute.xlu0 %216
  %218 = vrot.lane.b32.xlu0 %v211, 110
  %v219 = vpop.permute.xlu0 %218
  %220 = vrot.lane.b32.xlu0 %v212, 110
  %v221 = vpop.permute.xlu0 %220
  %vm222 = vcmask 900096
  %v223 = vsel %vm222, %v217, %v219
  %v224 = vsel %vm222, %v219, %v221
  %v228 = vadd.f32 %v188, %v217
  %v229 = vadd.f32 %v189, %v223
  %v230 = vadd.f32 %v190, %v224
  %231 = vrot.lane.b32.xlu0 %v31, 15
  %v232 = vpop.permute.xlu0 %231
  %233 = vrot.lane.b32.xlu0 %v32, 15
  %v234 = vpop.permute.xlu0 %233
  %vm235 = vcmask 121856
  %v236 = vsel %vm235, %v232, %v234
  %v240 = vmul.f32 %v191, %v232
  %v241 = vmul.f32 %v192, %v236
  %v242 = vmul.f32 %v193, %v234
  %243 = vset.pattern.permute.xlu0 6
  %244 = vperm.xlu0 %243, %v16
  %v245 = vpop.permute.xlu0 %244
  %v247 = vmul.f32 %v240, %v245
  %v248 = vmul.f32 %v241, %v245
  %v249 = vmul.f32 %v242, %v245
  %253 = vrot.lane.b32.xlu0 %v247, 96
  %v254 = vpop.permute.xlu0 %253
  %255 = vrot.lane.b32.xlu0 %v248, 96
  %v256 = vpop.permute.xlu0 %255
  %257 = vrot.lane.b32.xlu0 %v249, 96
  %v258 = vpop.permute.xlu0 %257
  %vm259 = vcmask 785408
  %v260 = vsel %vm259, %v254, %v256
  %v261 = vsel %vm259, %v256, %v258
  %v265 = vadd.f32 %v228, %v254
  %v266 = vadd.f32 %v229, %v260
  %v267 = vadd.f32 %v230, %v261
  %268 = vset.pattern.permute.xlu0 7
  %269 = vperm.xlu0 %268, %v16
  %v270 = vpop.permute.xlu0 %269
  %v272 = vmul.f32 %v191, %v270
  %v273 = vmul.f32 %v192, %v270
  %v274 = vmul.f32 %v193, %v270
  %278 = vrot.lane.b32.xlu0 %v272, 95
  %v279 = vpop.permute.xlu0 %278
  %280 = vrot.lane.b32.xlu0 %v273, 95
  %v281 = vpop.permute.xlu0 %280
  %282 = vrot.lane.b32.xlu0 %v274, 95
  %v283 = vpop.permute.xlu0 %282
  %vm284 = vcmask 777216
  %v285 = vsel %vm284, %v279, %v281
  %v286 = vsel %vm284, %v281, %v283
  %v290 = vadd.f32 %v265, %v279
  %v291 = vadd.f32 %v266, %v285
  %v292 = vadd.f32 %v267, %v286
  %293 = vrot.lane.b32.xlu0 %v37, 17
  %v294 = vpop.permute.xlu0 %293
  %295 = vrot.lane.b32.xlu0 %v38, 17
  %v296 = vpop.permute.xlu0 %295
  %vm297 = vcmask 138240
  %v298 = vsel %vm297, %v294, %v296
  %v302 = vmul.f32 %v191, %v294
  %v303 = vmul.f32 %v192, %v298
  %v304 = vmul.f32 %v193, %v296
  %305 = vset.pattern.permute.xlu0 8
  %306 = vperm.xlu0 %305, %v16
  %v307 = vpop.permute.xlu0 %306
  %v309 = vmul.f32 %v302, %v307
  %v310 = vmul.f32 %v303, %v307
  %v311 = vmul.f32 %v304, %v307
  %315 = vrot.lane.b32.xlu0 %v309, 94
  %v316 = vpop.permute.xlu0 %315
  %317 = vrot.lane.b32.xlu0 %v310, 94
  %v318 = vpop.permute.xlu0 %317
  %319 = vrot.lane.b32.xlu0 %v311, 94
  %v320 = vpop.permute.xlu0 %319
  %vm321 = vcmask 769024
  %v322 = vsel %vm321, %v316, %v318
  %v323 = vsel %vm321, %v318, %v320
  %v327 = vadd.f32 %v290, %v316
  %v328 = vadd.f32 %v291, %v322
  %v329 = vadd.f32 %v292, %v323
  %333 = vrot.lane.b32.xlu0 %v327, 17
  %v334 = vpop.permute.xlu0 %333
  %335 = vrot.lane.b32.xlu0 %v328, 17
  %v336 = vpop.permute.xlu0 %335
  %337 = vrot.lane.b32.xlu0 %v329, 17
  %v338 = vpop.permute.xlu0 %337
  %v339 = vsel %vm297, %v334, %v336
  %v340 = vsel %vm297, %v336, %v338
  %343 = vst [vmem:[%s3] sm:$0xff] %v339
  %344 = vst [vmem:[%s3 + $0x8] sm:$0xff] %v340
  // Predicated region
  $region14: #{depthwise_encoding.1} parent=0 // pred_check
    _
  $region15: #{depthwise_encoding.1} parent=0 // pred_check_branch
    %346 = sbr.rel (0) target = $region17
  $region16: #{depthwise_encoding.1} parent=0 // pred_region
    _
  $region17: #{depthwise_encoding.1} parent=0 // pred_fallthru
    _
  // Predicated region
  $region18: #{depthwise_encoding.1} parent=0 // pred_check
    _
  $region19: #{depthwise_encoding.1} parent=0 // pred_check_branch
    %348 = sbr.rel (0) target = $region21
  $region20: #{depthwise_encoding.1} parent=0 // pred_region
    _
  $region21: #{depthwise_encoding.1} parent=0 // pred_fallthru
    _

</llo_original>
